<compile_context>
chip_gen: v7x
topology: tpu7x:2x2x1
jax: 0.10.0
libtpu: 0.0.40
codegen_flags: <defaults>
</compile_context>

<pallas_src>
import jax
import jax.numpy as jnp
from jax.experimental import pallas as pl
from jax.experimental.pallas import tpu as pltpu


def _round_up(x, m):
    return ((x + m - 1) // m) * m


def _sublane_multiple(dtype):
    itemsize = jnp.dtype(dtype).itemsize
    if itemsize >= 4:
        return 8
    if itemsize == 2:
        return 16
    return 32


def _vmem_budget_bytes():
    """Generation-aware VMEM budget with ~15% headroom for Mosaic scratch."""
    cap = None
    try:
        info = pltpu.get_tpu_info()
        cap = getattr(info, "vmem_capacity_bytes", None)
    except Exception:
        cap = None
    if not cap:
        cap = 64 * 1024 * 1024  # conservative default (v7x per-TC VMEM)
    return int(0.85 * cap)


def _lm_head_kernel_single(x_ref, w_ref, o_ref):
    # x_ref: (tm, H) activations, w_ref: (tn, H) embedding rows,
    # o_ref: (tm, tn) logits tile.  Single reduction pass: contract the hidden
    # axis (dim 1 of both operands) on the MXU, f32 accumulation inside the dot.
    o_ref[...] = jax.lax.dot_general(
        x_ref[...], w_ref[...],
        dimension_numbers=(((1,), (1,)), ((), ())),
        preferred_element_type=jnp.float32,
    ).astype(o_ref.dtype)


def _lm_head_kernel_ksplit(x_ref, w_ref, o_ref, acc_ref):
    # Fallback for huge H: classic K-loop with resident f32 accumulator.
    @pl.when(pl.program_id(2) == 0)
    def _():
        acc_ref[...] = jnp.zeros_like(acc_ref)

    acc_ref[...] += jax.lax.dot_general(
        x_ref[...], w_ref[...],
        dimension_numbers=(((1,), (1,)), ((), ())),
        preferred_element_type=jnp.float32,
    )

    @pl.when(pl.program_id(2) == pl.num_programs(2) - 1)
    def _():
        o_ref[...] = acc_ref[...].astype(o_ref.dtype)


def gpt2_lm_head(hidden_state, embedding_weights, *, compute_dtype=None,
                 tm_cap=2048, tn_target=2048):
    """lm_logits = hidden_state @ embedding_weights.T  (GPT2LMHead.forward).

    compute_dtype: optionally cast operands (e.g. jnp.bfloat16) for MXU/HBM
    throughput; accumulation stays f32.  Default None keeps input numerics.
    """
    B, S, H = hidden_state.shape
    V, H_w = embedding_weights.shape
    assert H == H_w, "hidden size mismatch between activations and embeddings"
    M = B * S

    out_dtype = hidden_state.dtype
    x = hidden_state.reshape(M, H)
    w = embedding_weights
    if compute_dtype is not None:
        x = x.astype(compute_dtype)
        w = w.astype(compute_dtype)

    in_itemsize = jnp.dtype(x.dtype).itemsize
    out_itemsize = jnp.dtype(out_dtype).itemsize
    sub = _sublane_multiple(x.dtype)
    vmem_budget = _vmem_budget_bytes()

    def footprint(tm_, tn_, tk_, k_steps):
        # double-buffered input blocks + double-buffered output block
        f = 2 * (tm_ * tk_ + tn_ * tk_) * in_itemsize + 2 * tm_ * tn_ * out_itemsize
        if k_steps > 1:
            f += tm_ * tn_ * 4  # f32 accumulator scratch
        return f

    # --- choose tiles: prefer big tm (fewer W passes), then big tn ---------
    tm0 = _round_up(min(M, tm_cap), sub)
    tm_candidates = [tm0] + [t for t in (1024, 512, 256, 128, 64, 32, 16, 8)
                             if t < tm0 and t % sub == 0]
    tn_candidates = [t for t in (2048, 1024, 512, 256, 128) if t <= tn_target] or [128]

    chosen = None
    for tm_ in tm_candidates:
        for tn_ in tn_candidates:
            tn_eff = min(tn_, V)  # if >= V, use the full (possibly unaligned) V
            if footprint(tm_, tn_eff, H, 1) <= vmem_budget:
                chosen = (tm_, tn_eff, H, 1)
                break
        if chosen is not None:
            break

    if chosen is None:
        # Pathologically large H: split the reduction axis (rare; not hit for
        # any GPT-2-family hidden size).
        tm_ = _round_up(min(M, 256), sub)
        tn_ = min(256, V)
        tk_ = 1024
        while tk_ > 128 and footprint(tm_, tn_, tk_, 2) > vmem_budget:
            tk_ //= 2
        chosen = (tm_, tn_, tk_, pl.cdiv(H, tk_))

    tm, tn, tk, k_steps = chosen

    # Pad only the (small) activation matrix on M; never pad/copy W per call.
    Mp = _round_up(M, tm)
    if Mp != M:
        x = jnp.pad(x, ((0, Mp - M), (0, 0)))

    gi = Mp // tm
    gj = pl.cdiv(V, tn)

    flops = 2 * M * V * H
    bytes_accessed = (Mp * H * in_itemsize * gj      # x streamed once per vocab tile
                      + V * H * in_itemsize * gi     # W streamed once per M tile
                      + Mp * V * out_itemsize)       # logits written once
    cost = pl.CostEstimate(flops=flops, transcendentals=0,
                           bytes_accessed=int(bytes_accessed))

    vmem_limit = int(min(max(int(1.25 * footprint(tm, tn, tk, k_steps)),
                             16 * 1024 * 1024),
                         vmem_budget))

    if k_steps == 1:
        out_padded = pl.pallas_call(
            _lm_head_kernel_single,
            out_shape=jax.ShapeDtypeStruct((Mp, V), out_dtype),
            grid_spec=pltpu.PrefetchScalarGridSpec(
                num_scalar_prefetch=0,
                grid=(gi, gj),
                in_specs=[
                    pl.BlockSpec((tm, H), lambda i, j: (i, 0)),  # activations
                    pl.BlockSpec((tn, H), lambda i, j: (j, 0)),  # embedding rows
                ],
                out_specs=pl.BlockSpec((tm, tn), lambda i, j: (i, j)),
            ),
            compiler_params=pltpu.CompilerParams(
                dimension_semantics=("parallel", "parallel"),
                vmem_limit_bytes=vmem_limit,
            ),
            cost_estimate=cost,
        )(x, w)
    else:
        # K-split fallback: raggedness on the contraction axis is NOT allowed,
        # so pad H here (rare path; huge H only).
        # TODO(synk): pre-pad W once at model load instead of per call on this path.
        Hp = _round_up(H, tk)
        if Hp != H:
            x = jnp.pad(x, ((0, 0), (0, Hp - H)))
            w = jnp.pad(w, ((0, 0), (0, Hp - H)))
        out_padded = pl.pallas_call(
            _lm_head_kernel_ksplit,
            out_shape=jax.ShapeDtypeStruct((Mp, V), out_dtype),
            grid_spec=pltpu.PrefetchScalarGridSpec(
                num_scalar_prefetch=0,
                grid=(gi, gj, Hp // tk),
                in_specs=[
                    pl.BlockSpec((tm, tk), lambda i, j, k: (i, k)),
                    pl.BlockSpec((tn, tk), lambda i, j, k: (j, k)),
                ],
                out_specs=pl.BlockSpec((tm, tn), lambda i, j, k: (i, j)),
                scratch_shapes=[pltpu.VMEM((tm, tn), jnp.float32)],
            ),
            compiler_params=pltpu.CompilerParams(
                dimension_semantics=("parallel", "parallel", "arbitrary"),
                vmem_limit_bytes=vmem_limit,
            ),
            cost_estimate=cost,
        )(x, w)

    return out_padded[:M].reshape(B, S, V)


if __name__ == "__main__":
    # Small shapes consistent with the module: batch=2, seq=8, hidden=32, vocab=64.
    B, S, H, V = 2, 8, 32, 64

    key = jax.random.PRNGKey(0)
    k_x, k_w = jax.random.split(key)
    hidden = jax.random.normal(k_x, (B, S, H), dtype=jnp.float32)
    embed_w = 0.02 * jax.random.normal(k_w, (V, H), dtype=jnp.float32)

    logits = gpt2_lm_head(hidden, embed_w)
    logits = jax.block_until_ready(logits)

    ref = jnp.einsum("bsh,vh->bsv", hidden, embed_w,
                     precision=jax.lax.Precision.HIGHEST)

    assert logits.shape == (B, S, V)
    assert logits.dtype == hidden.dtype
    assert jnp.allclose(logits, ref, atol=1e-3, rtol=1e-3), "mismatch vs reference"

    print("KERNEL_OK")
</pallas_src>

<mosaic_0001>
module attributes {stable_mosaic.version = 11 : i64} {
  func.func @_lm_head_kernel_single(%arg0: i32, %arg1: i32, %arg2: memref<16x32xf32, #tpu.memory_space<vmem>>, %arg3: memref<64x32xf32, #tpu.memory_space<vmem>>, %arg4: memref<16x64xf32, #tpu.memory_space<vmem>>) attributes {dimension_semantics = [#tpu.dimension_semantics<parallel>, #tpu.dimension_semantics<parallel>], iteration_bounds = array<i64: 1, 1>, scalar_prefetch = 0 : i64, scratch_operands = 0 : i64, tpu.core_type = #tpu.core_type<tc>, window_params = [{transform_indices = @transform_0, window_bounds = array<i64: 16, 32>}, {transform_indices = @transform_1, window_bounds = array<i64: 64, 32>}, {transform_indices = @transform_2, window_bounds = array<i64: 16, 64>}]} {
    %c0 = arith.constant 0 : index
    %c0_0 = arith.constant 0 : index
    %0 = vector.load %arg2[%c0, %c0_0] : memref<16x32xf32, #tpu.memory_space<vmem>>, vector<16x32xf32>
    %c0_1 = arith.constant 0 : index
    %c0_2 = arith.constant 0 : index
    %1 = vector.load %arg3[%c0_1, %c0_2] : memref<64x32xf32, #tpu.memory_space<vmem>>, vector<64x32xf32>
    %cst = arith.constant dense<0.000000e+00> : vector<16x64xf32>
    %2 = tpu.matmul %0, %1, %cst {dimension_numbers = #tpu.dot_dimension_numbers<[1], [1], [0], [0], [0, 0, 1, 0], [], []>} : vector<16x32xf32>, vector<64x32xf32>, vector<16x64xf32> -> vector<16x64xf32>
    %c0_3 = arith.constant 0 : index
    %c0_4 = arith.constant 0 : index
    %3 = vector.load %arg4[%c0_3, %c0_4] : memref<16x64xf32, #tpu.memory_space<vmem>>, vector<16x64xf32>
    tpu.vector_store %arg4[%c0_3, %c0_4], %2 {strides = array<i32>} : memref<16x64xf32, #tpu.memory_space<vmem>>, vector<16x64xf32>,
    return
  }
  func.func @transform_0(%arg0: i32, %arg1: i32) -> (i32, i32) {
    %c0_i32 = arith.constant 0 : i32
    %c0_i32_0 = arith.constant 0 : i32
    return %arg0, %c0_i32 : i32, i32
  }
  func.func @transform_1(%arg0: i32, %arg1: i32) -> (i32, i32) {
    %c0_i32 = arith.constant 0 : i32
    %c0_i32_0 = arith.constant 0 : i32
    return %arg1, %c0_i32 : i32, i32
  }
  func.func @transform_2(%arg0: i32, %arg1: i32) -> (i32, i32) {
    %c0_i32 = arith.constant 0 : i32
    return %arg0, %arg1 : i32, i32
  }
}

</mosaic_0001>

<llo_original>
// kernel: tpu_custom_call.1
$region0: #{tpu_custom_call.1}
  #allocation0 [shape = 'u32[]', space=smem, size = 0x4, offset = 0x4, fixed_abs, tag = 'smem constant byte address 0x4 - core index']
  #allocation1 [shape = 'u32[144,128]{1,0:T(1,128)}', space=vmem, size = 0x12000, scoped, tag = 'internal scratch']
  %s0 = inlined_call_operand.vmem [shape: f32[16,32], index: 0, kind: input, shape index: {}]
  %s1 = inlined_call_operand.vmem [shape: f32[64,32], index: 1, kind: input, shape index: {}]
  %s2 = inlined_call_operand.hbm [shape: f32[16,64], index: 2, kind: output, shape index: {}]
  %s3 = sld [smem:[#allocation0]]
  $region18: #{tpu_custom_call.1} parent=0
    _
  %s5 = ssub.s32 1, %s3
  %s6 = scalar_select 0, %s5, %s3
  $region1: #{tpu_custom_call.1} parent=0
    #allocation2 [shape = 'u8[8192]{0}', space=vmem, size = 0x2000, scoped, tag = 'output window, operand 0, single buffered']
    #allocation3 [shape = 's32[1]{0}', space=sflag, size = 0x4, scoped, tag = 'scoped memory for tpu_custom_call.1']
    %7 = vsyncpa [#allocation3], 0
    // Predicated region
    $region2: #{tpu_custom_call.1} parent=1 // pred_check
      _
    $region3: #{tpu_custom_call.1} parent=1 // pred_check_branch
      %9 = sbr.rel (0) target = $region5
    $region4: #{tpu_custom_call.1} parent=1 // pred_region
      _
    $region5: #{tpu_custom_call.1} parent=1 // pred_fallthru
      _
    // Predicated region
    $region6: #{tpu_custom_call.1} parent=1 // pred_check
      _
    $region7: #{tpu_custom_call.1} parent=1 // pred_check_branch
      %11 = sbr.rel (0) target = $region9
    $region8: #{tpu_custom_call.1} parent=1 // pred_region
      _
    $region9: #{tpu_custom_call.1} parent=1 // pred_fallthru
      _
    %v12 = vld [vmem:[%s0] sm:$0xff]
    %v13 = vld [vmem:[%s0 + $0x8] sm:$0xff]
    %v14 = vld [vmem:[%s1] sm:$0xff]
    %v15 = vld [vmem:[%s1 + $0x8] sm:$0xff]
    %v16 = vld [vmem:[%s1 + $0x10] sm:$0xff]
    %v17 = vld [vmem:[%s1 + $0x18] sm:$0xff]
    %v18 = vld [vmem:[%s1 + $0x20] sm:$0xff]
    %v19 = vld [vmem:[%s1 + $0x28] sm:$0xff]
    %v20 = vld [vmem:[%s1 + $0x30] sm:$0xff]
    %v21 = vld [vmem:[%s1 + $0x38] sm:$0xff]
    %vm22 = vcmask 261120
    %v24 = vsel %vm22, %v12, 0
    %v27 = vsel %vm22, %v13, 0
    %v30 = vsel %vm22, %v14, 0
    %v33 = vsel %vm22, %v15, 0
    %v36 = vsel %vm22, %v16, 0
    %v39 = vsel %vm22, %v17, 0
    %v42 = vsel %vm22, %v18, 0
    %v45 = vsel %vm22, %v19, 0
    %v48 = vsel %vm22, %v20, 0
    %v51 = vsel %vm22, %v21, 0
    %53 = vmatprep.subr.mxu0 0.0
    %54 = vmatpush1.xpose.msra.mxu0 %v30
    %55 = vmatprep.subr.mxu0 0.0
    %56 = vmatpush1.xpose.msra.mxu0 %v33
    %57 = vmatprep.subr.mxu0 0.0
    %58 = vmatpush1.xpose.msra.mxu0 %v36
    %59 = vmatprep.subr.mxu0 0.0
    %60 = vmatpush1.xpose.msra.mxu0 %v39
    %61 = vmatprep.subr.mxu0 0.0
    %62 = vmatpush1.xpose.msra.mxu0 %v42
    %63 = vmatprep.subr.mxu0 0.0
    %64 = vmatpush1.xpose.msra.mxu0 %v45
    %65 = vmatprep.subr.mxu0 0.0
    %66 = vmatpush1.xpose.msra.mxu0 %v48
    %67 = vmatprep.subr.mxu0 0.0
    %68 = vmatpush1.xpose.msra.mxu0 %v51
    %69 = vmatprep.subr.mxu0 0.0
    %70 = vmatpush1.xpose.msra.mxu0 0.0
    %71 = vmatprep.subr.mxu0 0.0
    %72 = vmatpush1.xpose.msra.mxu0 0.0
    %73 = vmatprep.subr.mxu0 0.0
    %74 = vmatpush1.xpose.msra.mxu0 0.0
    %75 = vmatprep.subr.mxu0 0.0
    %76 = vmatpush1.xpose.msra.mxu0 0.0
    %77 = vmatprep.subr.mxu0 0.0
    %78 = vmatpush1.xpose.msra.mxu0 0.0
    %79 = vmatprep.subr.mxu0 0.0
    %80 = vmatpush1.xpose.msra.mxu0 0.0
    %81 = vmatprep.subr.mxu0 0.0
    %82 = vmatpush1.xpose.msra.mxu0 0.0
    %83 = vmatprep.subr.mxu0 0.0
    %84 = vmatpush1.xpose.msra.mxu0 0.0
    %85 = vmatprep.subr.mxu0 0.0
    %86 = vmatpush1.xpose.msra.mxu0 0.0
    %87 = vmatprep.subr.mxu0 0.0
    %88 = vmatpush1.xpose.msra.mxu0 0.0
    %89 = vmatprep.subr.mxu0 0.0
    %90 = vmatpush1.xpose.msra.mxu0 0.0
    %91 = vmatprep.subr.mxu0 0.0
    %92 = vmatpush1.xpose.msra.mxu0 0.0
    %93 = vmatprep.subr.mxu0 0.0
    %94 = vmatpush1.xpose.msra.mxu0 0.0
    %95 = vmatprep.subr.mxu0 0.0
    %96 = vmatpush1.xpose.msra.mxu0 0.0
    %97 = vmatprep.subr.mxu0 0.0
    %98 = vmatpush1.xpose.msra.mxu0 0.0
    %99 = vmatprep.subr.mxu0 0.0
    %100 = vmatpush1.xpose.msra.mxu0 0.0
    %101 = vmatprep.subr.mxu0 0.0
    %102 = vmatpush1.xpose.msra.mxu0 0.0
    %103 = vmatprep.subr.mxu0 0.0
    %104 = vmatpush1.xpose.msra.mxu0 0.0
    %105 = vmatprep.subr.mxu0 0.0
    %106 = vmatpush1.xpose.msra.mxu0 0.0
    %107 = vmatprep.subr.mxu0 0.0
    %108 = vmatpush1.xpose.msra.mxu0 0.0
    %109 = vmatprep.subr.mxu0 0.0
    %110 = vmatpush1.xpose.msra.mxu0 0.0
    %111 = vmatprep.subr.mxu0 0.0
    %112 = vmatpush1.xpose.msra.mxu0 0.0
    %113 = vmatprep.subr.mxu0 0.0
    %114 = vmatpush1.xpose.msra.mxu0 0.0
    %115 = vmatprep.subr.mxu0 0.0
    %116 = vmatpush1.xpose.msra.mxu0 0.0
    %117 = vmatprep.mubr.f32.mxu0 0.0
    %118 = vmatmul.mubr.f32.gmra.mrb[0].mxu0 %v24
    %v119 = vpop.f32.mrb[0].mxu0
    %v120 = vadd.f32 0.0, %v119
    %v121 = vpop.f32.mrb[0].mxu0
    %122 = vmatprep.mubr.f32.mxu0 0.0
    %123 = vmatmul.mubr.f32.gmra.mrb[0].mxu0 %v27
    %v124 = vpop.f32.mrb[0].mxu0
    %v125 = vadd.f32 0.0, %v124
    %v126 = vpop.f32.mrb[0].mxu0
    %127 = vdwg.mxu0
    %vm128 = vcmask 523264
    %129 = vst.msk [vmem:[#allocation2] sm:$0xff] %vm128, %v120
    %130 = vst.msk [vmem:[#allocation2 + $0x8] sm:$0xff] %vm128, %v125
    // Predicated region
    $region10: #{tpu_custom_call.1} parent=1 // pred_check
      _
    $region11: #{tpu_custom_call.1} parent=1 // pred_check_branch
      %132 = sbr.rel (0) target = $region13
    $region12: #{tpu_custom_call.1} parent=1 // pred_region
      %s134 = ssub.s32 256, 256
      %135 = vsyncadd [#allocation3], %s134
      %s136 = sshll.u32 [#allocation2], 4
      %s137 = int_to_ptr.vmem [resolvable:$true] %s136
      %142 = dma.vmem_to_hbm [thread:$0]  %s137, 256, %s2, [#allocation3], 128, 128, 8
    $region13: #{tpu_custom_call.1} parent=1 // pred_fallthru
      _
    // Predicated region
    $region14: #{tpu_custom_call.1} parent=1 // pred_check
      _
    $region15: #{tpu_custom_call.1} parent=1 // pred_check_branch
      %144 = sbr.rel (0) target = $region17
    $region16: #{tpu_custom_call.1} parent=1 // pred_region
      %145 = dma.done [#allocation3], 256
    $region17: #{tpu_custom_call.1} parent=1 // pred_fallthru
      _
    %146 = vsyncpa [#allocation3], 1

</llo_original>
